<compile_context>
chip_gen: v7x
topology: tpu7x:2x2x1
jax: 0.10.0
libtpu: 0.0.40
codegen_flags: <defaults>
</compile_context>

<pallas_src>
import functools

import jax
import jax.numpy as jnp
from jax.experimental import pallas as pl
from jax.experimental.pallas import tpu as pltpu

ALPHA_DER = 0.3


def _round_up(x, m):
    return ((x + m - 1) // m) * m


def _cdiv(a, b):
    return -(-a // b)


def _block_budget():
    """Per-input block budget (f32-equivalent bytes) and scoped-VMEM limit."""
    try:
        kind = jax.devices()[0].device_kind.lower()
    except Exception:  # pragma: no cover - defensive; fall back to conservative
        kind = ""
    if "v7" in kind or "7x" in kind:
        # 64 MiB physical VMEM: 4 MiB/input x 2 inputs x 2 bufs = 16 MiB of
        # pipeline buffers + f32 temporaries; 48 MiB scoped limit leaves room.
        return 4 * 1024 * 1024, 48 * 1024 * 1024
    if "v6" in kind:
        # 128 MiB physical VMEM; raise the scoped limit so temporaries on top of
        # 16 MiB of pipeline buffers never trip the 32 MiB default.
        return 4 * 1024 * 1024, 64 * 1024 * 1024
    # v5e / unknown: 16 MiB scoped default -> keep 2 MiB blocks (already <7%
    # per-step overhead at ~820 GB/s); modest explicit limit (128 MiB physical).
    return 2 * 1024 * 1024, 32 * 1024 * 1024


def _der_loss_kernel(new_ref, old_ref, out_ref, acc_ref, *, scale, tm, tn,
                     rows_per_split, m_true, n_true, mask_rows, mask_cols):
    # grid = (split [parallel], row_tiles [arbitrary], col_tiles [arbitrary])
    c = pl.program_id(0)
    i = pl.program_id(1)
    j = pl.program_id(2)
    ni = pl.num_programs(1)
    nj = pl.num_programs(2)

    @pl.when((i == 0) & (j == 0))
    def _():
        acc_ref[...] = jnp.zeros_like(acc_ref)

    d = new_ref[...].astype(jnp.float32) - old_ref[...].astype(jnp.float32)

    # Mask ragged edges / phantom split tiles in-kernel (no wrapper jnp.pad).
    # Uses the *nominal* global offsets, so clamped phantom blocks contribute 0.
    if mask_rows or mask_cols:
        mask = None
        if mask_rows:
            row0 = (c * rows_per_split + i) * tm
            rows = jax.lax.broadcasted_iota(jnp.int32, (tm, tn), 0) + row0
            mask = rows < m_true
        if mask_cols:
            col0 = j * tn
            cols = jax.lax.broadcasted_iota(jnp.int32, (tm, tn), 1) + col0
            cmask = cols < n_true
            mask = cmask if mask is None else (mask & cmask)
        d = jnp.where(mask, d, 0.0)

    sq = d * d
    # Layout-preserving sublane-group reshape; axis-0 reduce is pure VPU adds.
    acc_ref[...] += jnp.sum(sq.reshape(tm // 8, 8, tn), axis=0)

    @pl.when((i == ni - 1) & (j == nj - 1))
    def _():
        row = jnp.sum(acc_ref[...], axis=0, keepdims=True)           # (1, tn)
        out_ref[...] = scale * jnp.sum(row, axis=1, keepdims=True)   # (1, 1)


def der_loss(buf_output_new, buf_output_old, alpha_der=ALPHA_DER):
    assert buf_output_new.shape == buf_output_old.shape
    # Flatten to 2-D [M, N] (pure glue; no data movement).
    n_last = buf_output_new.shape[-1] if buf_output_new.ndim >= 1 else 1
    new2d = buf_output_new.reshape(-1, n_last)
    old2d = buf_output_old.reshape(-1, n_last)
    M, N = new2d.shape
    total_n = float(M * N)
    itemsize = jnp.dtype(new2d.dtype).itemsize

    # --- generation-aware tile selection ------------------------------------
    budget_bytes, vmem_limit = _block_budget()
    # Budget counted in f32-equivalent elements so the f32 diff/square
    # temporaries (tm x tn each) stay bounded regardless of input dtype.
    elem_budget = max(8 * 128, budget_bytes // 4)

    # Native sublane tile per dtype: 8 (f32) / 16 (bf16) / 32 (int8/fp8).
    sublane = 8 * max(1, 4 // itemsize)

    n_aligned = _round_up(N, 128)
    m_aligned = _round_up(M, sublane)

    if n_aligned * sublane <= elem_budget:
        # Full-row blocks: each block is one fully contiguous HBM DMA.
        tn = n_aligned
        tm = min(m_aligned, max(sublane, (elem_budget // tn) // sublane * sublane))
    else:
        # Very wide rows: tile the lane dim; last column tile is masked.
        tm = min(m_aligned, sublane)
        tn = min(n_aligned, max(128, (elem_budget // tm) // 128 * 128))

    m_tiles = _cdiv(M, tm)
    n_tiles = _cdiv(N, tn)

    # Always split row tiles across 2 TensorCores when there is anything to
    # split (v7x megacore); odd m_tiles handled via a clamped phantom tile.
    n_splits = 2 if m_tiles >= 2 else 1
    rows_per_split = _cdiv(m_tiles, n_splits)

    mask_rows = (n_splits * rows_per_split * tm) > M   # ragged rows or phantom tile
    mask_cols = (n_tiles * tn) > N                     # ragged columns

    if n_splits * rows_per_split > m_tiles:
        # Phantom tiles exist: clamp the block index so the DMA stays in
        # bounds; the kernel masks them to zero via the nominal offset.
        def in_map(c, i, j):
            return (jnp.minimum(c * rows_per_split + i, m_tiles - 1), j)
    else:
        def in_map(c, i, j):
            return (c * rows_per_split + i, j)

    kernel = functools.partial(
        _der_loss_kernel,
        scale=float(alpha_der) / total_n,
        tm=tm, tn=tn,
        rows_per_split=rows_per_split,
        m_true=M, n_true=N,
        mask_rows=mask_rows, mask_cols=mask_cols,
    )

    out = pl.pallas_call(
        kernel,
        out_shape=jax.ShapeDtypeStruct((n_splits, 1), jnp.float32),
        grid_spec=pltpu.PrefetchScalarGridSpec(
            num_scalar_prefetch=0,
            grid=(n_splits, rows_per_split, n_tiles),
            in_specs=[
                pl.BlockSpec((tm, tn), in_map),
                pl.BlockSpec((tm, tn), in_map),
            ],
            out_specs=pl.BlockSpec((1, 1), lambda c, i, j: (c, 0)),
            scratch_shapes=[pltpu.VMEM((8, tn), jnp.float32)],
        ),
        compiler_params=pltpu.CompilerParams(
            dimension_semantics=("parallel", "arbitrary", "arbitrary"),
            vmem_limit_bytes=vmem_limit,
        ),
        cost_estimate=pl.CostEstimate(
            flops=3 * M * N,
            transcendentals=0,
            bytes_accessed=2 * M * N * itemsize + 4 * n_splits,
        ),
    )(new2d, old2d)

    # Combine per-TensorCore partial sums (n_splits is 1 or 2).
    return jnp.sum(out)


if __name__ == "__main__":
    key = jax.random.PRNGKey(0)
    k1, k2, k3, k4, k5, k6 = jax.random.split(key, 6)

    # Case 1: aligned replay-buffer logits (batch=16, num_classes=128).
    a = jax.random.normal(k1, (16, 128), dtype=jnp.float32)
    b = jax.random.normal(k2, (16, 128), dtype=jnp.float32)
    loss = jax.block_until_ready(der_loss(a, b))
    ref = ALPHA_DER * jnp.mean((a - b) ** 2)
    assert jnp.allclose(loss, ref, rtol=1e-5, atol=1e-6), (loss, ref)

    # Case 2: unaligned, higher-rank input (exercises flatten + in-kernel mask).
    c = jax.random.normal(k3, (2, 7, 33), dtype=jnp.float32)
    d = jax.random.normal(k4, (2, 7, 33), dtype=jnp.float32)
    loss2 = jax.block_until_ready(der_loss(c, d))
    ref2 = ALPHA_DER * jnp.mean((c - d) ** 2)
    assert jnp.allclose(loss2, ref2, rtol=1e-5, atol=1e-6), (loss2, ref2)

    # Case 3: ragged rows + ragged columns together (both masks active).
    e = jax.random.normal(k5, (30, 161), dtype=jnp.float32)
    f = jax.random.normal(k6, (30, 161), dtype=jnp.float32)
    loss3 = jax.block_until_ready(der_loss(e, f))
    ref3 = ALPHA_DER * jnp.mean((e - f) ** 2)
    assert jnp.allclose(loss3, ref3, rtol=1e-5, atol=1e-6), (loss3, ref3)

    print("KERNEL_OK")
</pallas_src>

<mosaic_0001>
module attributes {stable_mosaic.version = 11 : i64} {
  func.func @_der_loss_kernel(%arg0: i32, %arg1: i32, %arg2: i32, %arg3: memref<16x128xf32, #tpu.memory_space<vmem>>, %arg4: memref<16x128xf32, #tpu.memory_space<vmem>>, %arg5: memref<1x1xf32, #tpu.memory_space<vmem>>, %arg6: memref<8x128xf32, #tpu.memory_space<vmem>>) attributes {dimension_semantics = [#tpu.dimension_semantics<parallel>, #tpu.dimension_semantics<arbitrary>, #tpu.dimension_semantics<arbitrary>], iteration_bounds = array<i64: 1, 1, 1>, scalar_prefetch = 0 : i64, scratch_operands = 1 : i64, tpu.core_type = #tpu.core_type<tc>, window_params = [{transform_indices = @transform_0, window_bounds = array<i64: 16, 128>}, {transform_indices = @transform_1, window_bounds = array<i64: 16, 128>}, {transform_indices = @transform_2, window_bounds = array<i64: 1, 1>}]} {
    %c0_i32 = arith.constant 0 : i32
    %0 = arith.cmpi eq, %arg1, %c0_i32 : i32
    %c0_i32_0 = arith.constant 0 : i32
    %1 = arith.cmpi eq, %arg2, %c0_i32_0 : i32
    %2 = arith.andi %0, %1 : i1
    %3 = arith.extui %2 : i1 to i32
    %c0_i32_1 = arith.constant 0 : i32
    %4 = arith.cmpi ne, %3, %c0_i32_1 : i32
    scf.if %4 {
      %cst_12 = arith.constant 0.000000e+00 : f32
      %19 = vector.broadcast %cst_12 : f32 to vector<8x128xf32>
      %c0_13 = arith.constant 0 : index
      %c0_14 = arith.constant 0 : index
      %20 = vector.load %arg6[%c0_13, %c0_14] : memref<8x128xf32, #tpu.memory_space<vmem>>, vector<8x128xf32>
      tpu.vector_store %arg6[%c0_13, %c0_14], %19 {strides = array<i32>} : memref<8x128xf32, #tpu.memory_space<vmem>>, vector<8x128xf32>,
    } else {
    }
    %c0 = arith.constant 0 : index
    %c0_2 = arith.constant 0 : index
    %5 = vector.load %arg3[%c0, %c0_2] : memref<16x128xf32, #tpu.memory_space<vmem>>, vector<16x128xf32>
    %c0_3 = arith.constant 0 : index
    %c0_4 = arith.constant 0 : index
    %6 = vector.load %arg4[%c0_3, %c0_4] : memref<16x128xf32, #tpu.memory_space<vmem>>, vector<16x128xf32>
    %7 = arith.subf %5, %6 : vector<16x128xf32>
    %8 = arith.mulf %7, %7 : vector<16x128xf32>
    %c0_5 = arith.constant 0 : index
    %c0_6 = arith.constant 0 : index
    %9 = vector.load %arg6[%c0_5, %c0_6] : memref<8x128xf32, #tpu.memory_space<vmem>>, vector<8x128xf32>
    %10 = vector.shape_cast %8 : vector<16x128xf32> to vector<2x8x128xf32>
    %cst = arith.constant dense<0.000000e+00> : vector<8x128xf32>
    %11 = vector.multi_reduction <add>, %10, %cst [0] : vector<2x8x128xf32> to vector<8x128xf32>
    %12 = arith.addf %9, %11 : vector<8x128xf32>
    %c0_7 = arith.constant 0 : index
    %c0_8 = arith.constant 0 : index
    %13 = vector.load %arg6[%c0_7, %c0_8] : memref<8x128xf32, #tpu.memory_space<vmem>>, vector<8x128xf32>
    tpu.vector_store %arg6[%c0_7, %c0_8], %12 {strides = array<i32>} : memref<8x128xf32, #tpu.memory_space<vmem>>, vector<8x128xf32>,
    %c0_i32_9 = arith.constant 0 : i32
    %14 = arith.cmpi eq, %arg1, %c0_i32_9 : i32
    %c0_i32_10 = arith.constant 0 : i32
    %15 = arith.cmpi eq, %arg2, %c0_i32_10 : i32
    %16 = arith.andi %14, %15 : i1
    %17 = arith.extui %16 : i1 to i32
    %c0_i32_11 = arith.constant 0 : i32
    %18 = arith.cmpi ne, %17, %c0_i32_11 : i32
    scf.if %18 {
      %c0_12 = arith.constant 0 : index
      %c0_13 = arith.constant 0 : index
      %19 = vector.load %arg6[%c0_12, %c0_13] : memref<8x128xf32, #tpu.memory_space<vmem>>, vector<8x128xf32>
      %cst_14 = arith.constant dense<0.000000e+00> : vector<128xf32>
      %20 = vector.multi_reduction <add>, %19, %cst_14 [0] : vector<8x128xf32> to vector<128xf32>
      %21 = vector.shape_cast %20 : vector<128xf32> to vector<1x128xf32>
      %cst_15 = arith.constant dense<0.000000e+00> : vector<1xf32>
      %22 = vector.multi_reduction <add>, %21, %cst_15 [1] : vector<1x128xf32> to vector<1xf32>
      %23 = vector.shape_cast %22 : vector<1xf32> to vector<1x1xf32>
      %cst_16 = arith.constant 1.46484381E-4 : f32
      %24 = vector.broadcast %cst_16 : f32 to vector<1x1xf32>
      %25 = arith.mulf %24, %23 : vector<1x1xf32>
      %c0_17 = arith.constant 0 : index
      %c0_18 = arith.constant 0 : index
      %26 = vector.load %arg5[%c0_17, %c0_18] : memref<1x1xf32, #tpu.memory_space<vmem>>, vector<1x1xf32>
      tpu.vector_store %arg5[%c0_17, %c0_18], %25 {strides = array<i32>} : memref<1x1xf32, #tpu.memory_space<vmem>>, vector<1x1xf32>,
    } else {
    }
    return
  }
  func.func @transform_0(%arg0: i32, %arg1: i32, %arg2: i32) -> (i32, i32) {
    %c1_i32 = arith.constant 1 : i32
    %0 = arith.muli %arg0, %c1_i32 : i32
    %1 = arith.addi %0, %arg1 : i32
    %c0_i32 = arith.constant 0 : i32
    return %1, %arg2 : i32, i32
  }
  func.func @transform_1(%arg0: i32, %arg1: i32, %arg2: i32) -> (i32, i32) {
    %c1_i32 = arith.constant 1 : i32
    %0 = arith.muli %arg0, %c1_i32 : i32
    %1 = arith.addi %0, %arg1 : i32
    %c0_i32 = arith.constant 0 : i32
    return %1, %arg2 : i32, i32
  }
  func.func @transform_2(%arg0: i32, %arg1: i32, %arg2: i32) -> (i32, i32) {
    %c0_i32 = arith.constant 0 : i32
    %c0_i32_0 = arith.constant 0 : i32
    return %arg0, %c0_i32 : i32, i32
  }
}

</mosaic_0001>

<llo_original>
// kernel: tpu_custom_call.1
$region0: #{tpu_custom_call.1}
  #allocation0 [shape = 'u32[]', space=smem, size = 0x4, offset = 0x4, fixed_abs, tag = 'smem constant byte address 0x4 - core index']
  #allocation1 [shape = 'u32[144,128]{1,0:T(1,128)}', space=vmem, size = 0x12000, scoped, tag = 'internal scratch']
  #allocation2 [shape = 'f32[8,128]{1,0:T(8,128)}', space=vmem, size = 0x1000, scoped, tag = 'scratch operand']
  %s0 = inlined_call_operand.hbm [shape: f32[16,128], index: 0, kind: input, shape index: {}]
  %s1 = inlined_call_operand.hbm [shape: f32[16,128], index: 1, kind: input, shape index: {}]
  %s2 = inlined_call_operand.hbm [shape: f32[1,1], index: 2, kind: output, shape index: {}]
  %s3 = sld [smem:[#allocation0]]
  $region34: #{tpu_custom_call.1} parent=0
    _
  %s5 = ssub.s32 1, %s3
  %s6 = scalar_select 0, %s5, %s3
  $region1: #{tpu_custom_call.1} parent=0
    #allocation3 [shape = 'u8[8192]{0}', space=vmem, size = 0x2000, scoped, tag = 'input window, operand 0, single buffered']
    #allocation4 [shape = 's32[1]{0}', space=sflag, size = 0x4, scoped, tag = 'scoped memory for tpu_custom_call.1']
    #allocation5 [shape = 's32[1]{0}', space=sflag, size = 0x4, scoped, tag = 'scoped memory for tpu_custom_call.1']
    #allocation6 [shape = 'u8[8192]{0}', space=vmem, size = 0x2000, scoped, tag = 'input window, operand 1, single buffered']
    #allocation7 [shape = 's32[1]{0}', space=sflag, size = 0x4, scoped, tag = 'scoped memory for tpu_custom_call.1']
    #allocation8 [shape = 'u8[512]{0}', space=vmem, size = 0x400, scoped, tag = 'output window, operand 0, single buffered']
    %7 = vsyncpa [#allocation4], 0
    %8 = vsyncpa [#allocation7], 0
    %9 = vsyncpa [#allocation5], 0
    // Predicated region
    $region2: #{tpu_custom_call.1} parent=1 // pred_check
      _
    $region3: #{tpu_custom_call.1} parent=1 // pred_check_branch
      %11 = sbr.rel (0) target = $region5
    $region4: #{tpu_custom_call.1} parent=1 // pred_region
      %s12 = sadd.s32 0, 0
      %s13 = smul.u32 2, %s12
      %s15 = ssub.s32 256, 256
      %16 = vsyncadd [#allocation4], %s15
      %s17 = smul.addr %s13, 128
      %s18 = scalar_lea.hbm %s0, %s17
      %s19 = sshll.u32 [#allocation3], 4
      %s20 = int_to_ptr.vmem [resolvable:$true] %s19
      %25 = dma.hbm_to_vmem [thread:$0]  %s18, 256, %s20, [#allocation4], 128, 128, 8
    $region5: #{tpu_custom_call.1} parent=1 // pred_fallthru
      _
    // Predicated region
    $region6: #{tpu_custom_call.1} parent=1 // pred_check
      _
    $region7: #{tpu_custom_call.1} parent=1 // pred_check_branch
      %27 = sbr.rel (0) target = $region9
    $region8: #{tpu_custom_call.1} parent=1 // pred_region
      %s28 = sadd.s32 0, 0
      %s29 = smul.u32 2, %s28
      %s31 = ssub.s32 256, 256
      %32 = vsyncadd [#allocation7], %s31
      %s33 = smul.addr %s29, 128
      %s34 = scalar_lea.hbm %s1, %s33
      %s35 = sshll.u32 [#allocation6], 4
      %s36 = int_to_ptr.vmem [resolvable:$true] %s35
      %41 = dma.hbm_to_vmem [thread:$0]  %s34, 256, %s36, [#allocation7], 128, 128, 8
    $region9: #{tpu_custom_call.1} parent=1 // pred_fallthru
      _
    // Predicated region
    $region10: #{tpu_custom_call.1} parent=1 // pred_check
      _
    $region11: #{tpu_custom_call.1} parent=1 // pred_check_branch
      %43 = sbr.rel (0) target = $region13
    $region12: #{tpu_custom_call.1} parent=1 // pred_region
      %44 = dma.done [#allocation4], 256
    $region13: #{tpu_custom_call.1} parent=1 // pred_fallthru
      _
    // Predicated region
    $region14: #{tpu_custom_call.1} parent=1 // pred_check
      _
    $region15: #{tpu_custom_call.1} parent=1 // pred_check_branch
      %46 = sbr.rel (0) target = $region17
    $region16: #{tpu_custom_call.1} parent=1 // pred_region
      %47 = dma.done [#allocation7], 256
    $region17: #{tpu_custom_call.1} parent=1 // pred_fallthru
      _
    %s48 = sadd.s32 0, 0
    %s49 = smul.u32 2, %s48
    %s50 = sadd.s32 0, 0
    %s51 = smul.u32 2, %s50
    %p52 = scmp.eq.s32.totalorder 0, 0
    %p53 = scmp.eq.s32.totalorder 0, 0
    %p54 = pnand %p52, %p53
    %p55 = pneg %p54
    // Predicated region
    $region18: #{tpu_custom_call.1} parent=1 // pred_check
      _
    $region19: #{tpu_custom_call.1} parent=1 // pred_check_branch
      %57 = sbr.rel (%p54) target = $region21
    $region20: #{tpu_custom_call.1} parent=1 // pred_region
      %58 = vst [vmem:[#allocation2] sm:$0xff] 0.0
    $region21: #{tpu_custom_call.1} parent=1 // pred_fallthru
      _
    %v59 = vld [vmem:[#allocation3] sm:$0xff]
    %v60 = vld [vmem:[#allocation3 + $0x8] sm:$0xff]
    %v61 = vld [vmem:[#allocation6] sm:$0xff]
    %v62 = vld [vmem:[#allocation6 + $0x8] sm:$0xff]
    %v63 = vsub.f32 %v59, %v61
    %v64 = vsub.f32 %v60, %v62
    %v65 = vmul.f32 %v63, %v63
    %v66 = vmul.f32 %v64, %v64
    %v67 = vld [vmem:[#allocation2] sm:$0xff]
    %v68 = vadd.f32 %v65, %v66
    %v69 = vadd.f32 %v67, %v68
    %70 = vst [vmem:[#allocation2] sm:$0xff] %v69
    // Predicated region
    $region22: #{tpu_custom_call.1} parent=1 // pred_check
      _
    $region23: #{tpu_custom_call.1} parent=1 // pred_check_branch
      %72 = sbr.rel (%p54) target = $region25
    $region24: #{tpu_custom_call.1} parent=1 // pred_region
      %v73 = vld [vmem:[#allocation2] sm:$0xff]
      %v74 = vrot.slane %v73, 4
      %v75 = vadd.f32 %v73, %v74
      %v76 = vrot.slane %v75, 2
      %v77 = vadd.f32 %v75, %v76
      %v78 = vrot.slane %v77, 1
      %v79 = vadd.f32 %v77, %v78
      %80 = vadd.xlane.f32.xlu0 %v79
      %v81 = vpop.xlane.xlu0 %80
      %v82 = vmul.f32 %v81, 0.00014648438
      %vm83 = vcmask 0
      %84 = vst.msk [vmem:[#allocation8] sm:$0x1] %vm83, %v82
    $region25: #{tpu_custom_call.1} parent=1 // pred_fallthru
      _
    // Predicated region
    $region26: #{tpu_custom_call.1} parent=1 // pred_check
      _
    $region27: #{tpu_custom_call.1} parent=1 // pred_check_branch
      %86 = sbr.rel (0) target = $region29
    $region28: #{tpu_custom_call.1} parent=1 // pred_region
      %s88 = ssub.s32 16, 16
      %89 = vsyncadd [#allocation5], %s88
      %s91 = sshll.u32 [#allocation8], 4
      %s92 = int_to_ptr.vmem [resolvable:$true] %s91
      %94 = dma.vmem_to_hbm [thread:$0]  %s92, 16, %s2, [#allocation5]
    $region29: #{tpu_custom_call.1} parent=1 // pred_fallthru
      _
    // Predicated region
    $region30: #{tpu_custom_call.1} parent=1 // pred_check
      _
    $region31: #{tpu_custom_call.1} parent=1 // pred_check_branch
      %96 = sbr.rel (0) target = $region33
    $region32: #{tpu_custom_call.1} parent=1 // pred_region
      %97 = dma.done [#allocation5], 16
    $region33: #{tpu_custom_call.1} parent=1 // pred_fallthru
      _
    %98 = vsyncpa [#allocation4], 1
    %99 = vsyncpa [#allocation7], 1
    %100 = vsyncpa [#allocation5], 1

</llo_original>
